<compile_context>
chip_gen: v7x
topology: tpu7x:2x2x1
jax: 0.10.0
libtpu: 0.0.40
codegen_flags: <defaults>
</compile_context>

<pallas_src>
import functools

import jax
import jax.numpy as jnp
from jax.experimental import pallas as pl
from jax.experimental.pallas import tpu as pltpu

_LANES = 128


def _round_up(a, m):
    return ((a + m - 1) // m) * m


def _kr_partial_kernel(n_ref, x_ref, t_ref, acc_ref, *, v0, v1, tm, num_blocks,
                       steps_per_core):
    """Per-core masked partial sums/counts for both classes.

    acc_ref block: (1, 4, 8, 128) f32 = [sum_v0, count_v0, sum_v1, count_v1],
    each an (8, 128) vector partial accumulator, resident across the
    "arbitrary" grid axis for this core.
    """
    c = pl.program_id(0)                 # parallel (core) axis
    s = pl.program_id(1)                 # sequential block axis (per core)
    b = c * steps_per_core + s           # global block id (may overhang)

    # Zero this core's partial accumulators once.
    @pl.when(s == 0)
    def _():
        acc_ref[...] = jnp.zeros_like(acc_ref)

    def _accumulate(extra_valid):
        x = x_ref[...].astype(jnp.float32)
        t = t_ref[...]
        # Widen narrow targets in-registers (HBM traffic stays narrow).
        if jnp.issubdtype(t.dtype, jnp.floating):
            t = t.astype(jnp.float32)
        else:
            t = t.astype(jnp.int32)
        cond0 = t == v0
        cond1 = t == v1
        if extra_valid is not None:
            cond0 = jnp.logical_and(cond0, extra_valid)
            cond1 = jnp.logical_and(cond1, extra_valid)

        def _vreg_sum(v):
            # (tm, 128) -> (8, 128): layout-preserving reshape, then pure
            # VALU vreg adds over the leading axis (no XLU reduce per tile).
            return jnp.sum(v.reshape(tm // 8, 8, _LANES), axis=0)

        acc_ref[0, 0, :, :] += _vreg_sum(jnp.where(cond0, x, 0.0))
        acc_ref[0, 1, :, :] += _vreg_sum(jnp.where(cond0, 1.0, 0.0))
        acc_ref[0, 2, :, :] += _vreg_sum(jnp.where(cond1, x, 0.0))
        acc_ref[0, 3, :, :] += _vreg_sum(jnp.where(cond1, 1.0, 0.0))

    # Fast path: full interior blocks, no validity mask.
    @pl.when(b < num_blocks - 1)
    def _():
        _accumulate(None)

    # Masked path: only the globally-last block (lane pad + ragged rows).
    @pl.when(b == num_blocks - 1)
    def _():
        n = n_ref[0]
        base = b * (tm * _LANES)
        ridx = jax.lax.broadcasted_iota(jnp.int32, (tm, _LANES), 0)
        cidx = jax.lax.broadcasted_iota(jnp.int32, (tm, _LANES), 1)
        valid = (base + ridx * _LANES + cidx) < n
        _accumulate(valid)

    # Steps with b >= num_blocks (tail core overhang) contribute nothing.


def kr_loss(input_, target, true_values=(0, 1), *, max_block_rows=1024,
            num_cores=2):
    """Pallas implementation of torchlip F.kr_loss(input, target, true_values)."""
    x = input_.reshape(-1)
    t = target.reshape(-1)
    if x.size != t.size:
        raise ValueError("input and target must have the same number of elements")
    n = int(x.shape[0])
    if n == 0:
        raise ValueError("kr_loss requires a non-empty input")

    rows = (n + _LANES - 1) // _LANES
    padded = rows * _LANES
    if padded != n:
        # TODO(synk): this lane-alignment pad is a full-array XLA copy when
        # n % 128 != 0; removing it entirely would need manual ANY-memory DMAs
        # for the ragged tail.  It is skipped whenever n is lane-aligned.
        x = jnp.pad(x, (0, padded - n))
        t = jnp.pad(t, (0, padded - n))
    x2 = x.reshape(rows, _LANES)
    t2 = t.reshape(rows, _LANES)

    # Tile rows: 1024 rows (512 KiB f32) at steady state, shrink for tiny
    # inputs.  Multiple of 32 keeps blocks tile-aligned for int8/bf16/f32.
    tm = min(max_block_rows, _round_up(rows, 32))
    num_blocks = (rows + tm - 1) // tm
    steps_per_core = (num_blocks + num_cores - 1) // num_cores

    def data_index_map(c, s, n_ref):
        # Clamp so the DMA source block is always in range; overhang steps
        # are skipped inside the kernel.
        return (jnp.minimum(c * steps_per_core + s, num_blocks - 1), 0)

    kernel = functools.partial(
        _kr_partial_kernel,
        v0=true_values[0],
        v1=true_values[1],
        tm=tm,
        num_blocks=num_blocks,
        steps_per_core=steps_per_core,
    )

    parts = pl.pallas_call(
        kernel,
        out_shape=jax.ShapeDtypeStruct((num_cores, 4, 8, _LANES), jnp.float32),
        grid_spec=pltpu.PrefetchScalarGridSpec(
            num_scalar_prefetch=1,
            grid=(num_cores, steps_per_core),
            in_specs=[
                pl.BlockSpec((tm, _LANES), data_index_map),
                pl.BlockSpec((tm, _LANES), data_index_map),
            ],
            out_specs=pl.BlockSpec((1, 4, 8, _LANES),
                                   lambda c, s, n_ref: (c, 0, 0, 0)),
        ),
        compiler_params=pltpu.CompilerParams(
            dimension_semantics=("parallel", "arbitrary"),
            vmem_limit_bytes=32 * 1024 * 1024,
        ),
    )(jnp.array([n], dtype=jnp.int32), x2, t2)

    # Tiny final combine of per-core vector partials (8K floats).
    sums = jnp.sum(parts, axis=(0, 2, 3))      # (4,) = [s0, c0, s1, c1]
    # kr = mean(x[t == v0]) - mean(x[t == v1])
    return sums[0] / sums[1] - sums[2] / sums[3]


class KRLoss:
    """Mirror of the PyTorch module: forward(input, target) -> kr_loss."""

    def __init__(self, true_values=(0, 1)):
        self.true_values = tuple(true_values)

    def __call__(self, input, target):
        return kr_loss(input, target, self.true_values)


def _kr_loss_ref(input_, target, true_values=(0, 1)):
    """Pure-JAX reference mirroring the PyTorch semantics."""
    x = input_.reshape(-1).astype(jnp.float32)
    t = target.reshape(-1)
    v0, v1 = true_values
    m0 = t == v0
    m1 = t == v1
    mean0 = jnp.sum(jnp.where(m0, x, 0.0)) / jnp.sum(m0.astype(jnp.float32))
    mean1 = jnp.sum(jnp.where(m1, x, 0.0)) / jnp.sum(m1.astype(jnp.float32))
    return mean0 - mean1


if __name__ == "__main__":
    key = jax.random.PRNGKey(0)
    k1, k2 = jax.random.split(key)

    loss_mod = KRLoss(true_values=(0, 1))

    # Typical W-1 discriminator setup: (batch, 1) scores + binary int8 labels.
    # batch deliberately NOT a multiple of 128 to exercise the masked tail.
    batch = 200
    x = jax.random.normal(k1, (batch, 1), dtype=jnp.float32)
    t = (jnp.arange(batch, dtype=jnp.int32) % 2).astype(jnp.int8).reshape(batch, 1)

    loss = jax.block_until_ready(loss_mod(x, t))
    ref = _kr_loss_ref(x, t, (0, 1))
    assert jnp.allclose(loss, ref, rtol=1e-5, atol=1e-5), (loss, ref)

    # Moderate multi-tile case: exercises fast + masked paths, both cores and
    # the overhang-skip step (rows=2344 -> 3 blocks over a (2, 2) grid).
    n2 = 300_000
    x2 = jax.random.normal(k2, (n2,), dtype=jnp.float32)
    t2 = (jnp.arange(n2, dtype=jnp.int32) % 2).astype(jnp.int8)
    loss2 = jax.block_until_ready(kr_loss(x2, t2, (0, 1)))
    ref2 = _kr_loss_ref(x2, t2, (0, 1))
    assert jnp.allclose(loss2, ref2, rtol=1e-5, atol=1e-5), (loss2, ref2)

    print("KERNEL_OK")
</pallas_src>

<mosaic_0001>
module attributes {stable_mosaic.version = 11 : i64} {
  func.func @_kr_partial_kernel(%arg0: i32, %arg1: i32, %arg2: memref<1xi32, #tpu.memory_space<smem>>, %arg3: memref<32x128xf32, #tpu.memory_space<vmem>>, %arg4: memref<32x128xi8, #tpu.memory_space<vmem>>, %arg5: memref<1x4x8x128xf32, #tpu.memory_space<vmem>>) attributes {dimension_semantics = [#tpu.dimension_semantics<parallel>, #tpu.dimension_semantics<arbitrary>], iteration_bounds = array<i64: 2, 1>, scalar_prefetch = 1 : i64, scratch_operands = 0 : i64, tpu.core_type = #tpu.core_type<tc>, window_params = [{transform_indices = @transform_0, window_bounds = array<i64: 32, 128>}, {transform_indices = @transform_1, window_bounds = array<i64: 32, 128>}, {transform_indices = @transform_2, window_bounds = array<i64: 1, 4, 8, 128>}]} {
    %c1_i32 = arith.constant 1 : i32
    %0 = arith.muli %arg0, %c1_i32 : i32
    %1 = arith.addi %0, %arg1 : i32
    %c0_i32 = arith.constant 0 : i32
    %2 = arith.cmpi eq, %arg1, %c0_i32 : i32
    %3 = arith.extui %2 : i1 to i32
    %c0_i32_0 = arith.constant 0 : i32
    %4 = arith.cmpi ne, %3, %c0_i32_0 : i32
    scf.if %4 {
      %cst = arith.constant 0.000000e+00 : f32
      %11 = vector.broadcast %cst : f32 to vector<1x4x8x128xf32>
      %c0 = arith.constant 0 : index
      %c0_5 = arith.constant 0 : index
      %c0_6 = arith.constant 0 : index
      %c0_7 = arith.constant 0 : index
      %12 = vector.load %arg5[%c0, %c0_5, %c0_6, %c0_7] : memref<1x4x8x128xf32, #tpu.memory_space<vmem>>, vector<1x4x8x128xf32>
      tpu.vector_store %arg5[%c0, %c0_5, %c0_6, %c0_7], %11 {strides = array<i32>} : memref<1x4x8x128xf32, #tpu.memory_space<vmem>>, vector<1x4x8x128xf32>,
    } else {
    }
    %c0_i32_1 = arith.constant 0 : i32
    %5 = arith.cmpi slt, %1, %c0_i32_1 : i32
    %6 = arith.extui %5 : i1 to i32
    %c0_i32_2 = arith.constant 0 : i32
    %7 = arith.cmpi ne, %6, %c0_i32_2 : i32
    scf.if %7 {
      %c0 = arith.constant 0 : index
      %c0_5 = arith.constant 0 : index
      %11 = vector.load %arg3[%c0, %c0_5] : memref<32x128xf32, #tpu.memory_space<vmem>>, vector<32x128xf32>
      %c0_6 = arith.constant 0 : index
      %c0_7 = arith.constant 0 : index
      %12 = vector.load %arg4[%c0_6, %c0_7] : memref<32x128xi8, #tpu.memory_space<vmem>>, vector<32x128xi8>
      %13 = arith.extsi %12 : vector<32x128xi8> to vector<32x128xi32>
      %c0_i32_8 = arith.constant 0 : i32
      %14 = vector.broadcast %c0_i32_8 : i32 to vector<32x128xi32>
      %15 = arith.cmpi eq, %13, %14 : vector<32x128xi32>
      %c1_i32_9 = arith.constant 1 : i32
      %16 = vector.broadcast %c1_i32_9 : i32 to vector<32x128xi32>
      %17 = arith.cmpi eq, %13, %16 : vector<32x128xi32>
      %c0_10 = arith.constant 0 : index
      %c0_11 = arith.constant 0 : index
      %c0_12 = arith.constant 0 : index
      %c0_13 = arith.constant 0 : index
      %18 = vector.load %arg5[%c0_10, %c0_11, %c0_12, %c0_13] : memref<1x4x8x128xf32, #tpu.memory_space<vmem>>, vector<1x1x8x128xf32>
      %19 = vector.shape_cast %18 : vector<1x1x8x128xf32> to vector<8x128xf32>
      %cst = arith.constant 0.000000e+00 : f32
      %20 = vector.broadcast %cst : f32 to vector<32x128xf32>
      %21 = arith.select %15, %11, %20 : vector<32x128xi1>, vector<32x128xf32>
      %22 = vector.shape_cast %21 : vector<32x128xf32> to vector<4x8x128xf32>
      %cst_14 = arith.constant dense<0.000000e+00> : vector<8x128xf32>
      %23 = vector.multi_reduction <add>, %22, %cst_14 [0] : vector<4x8x128xf32> to vector<8x128xf32>
      %24 = arith.addf %19, %23 : vector<8x128xf32>
      %c0_15 = arith.constant 0 : index
      %c0_16 = arith.constant 0 : index
      %c0_17 = arith.constant 0 : index
      %c0_18 = arith.constant 0 : index
      %25 = vector.load %arg5[%c0_15, %c0_16, %c0_17, %c0_18] : memref<1x4x8x128xf32, #tpu.memory_space<vmem>>, vector<1x1x8x128xf32>
      %26 = vector.shape_cast %25 : vector<1x1x8x128xf32> to vector<8x128xf32>
      %27 = vector.shape_cast %24 : vector<8x128xf32> to vector<1x1x8x128xf32>
      tpu.vector_store %arg5[%c0_15, %c0_16, %c0_17, %c0_18], %27 {strides = array<i32>} : memref<1x4x8x128xf32, #tpu.memory_space<vmem>>, vector<1x1x8x128xf32>,
      %c0_19 = arith.constant 0 : index
      %c1 = arith.constant 1 : index
      %c0_20 = arith.constant 0 : index
      %c0_21 = arith.constant 0 : index
      %28 = vector.load %arg5[%c0_19, %c1, %c0_20, %c0_21] : memref<1x4x8x128xf32, #tpu.memory_space<vmem>>, vector<1x1x8x128xf32>
      %29 = vector.shape_cast %28 : vector<1x1x8x128xf32> to vector<8x128xf32>
      %cst_22 = arith.constant 1.000000e+00 : f32
      %cst_23 = arith.constant 0.000000e+00 : f32
      %30 = vector.broadcast %cst_22 : f32 to vector<32x128xf32>
      %31 = vector.broadcast %cst_23 : f32 to vector<32x128xf32>
      %32 = arith.select %15, %30, %31 : vector<32x128xi1>, vector<32x128xf32>
      %33 = vector.shape_cast %32 : vector<32x128xf32> to vector<4x8x128xf32>
      %cst_24 = arith.constant dense<0.000000e+00> : vector<8x128xf32>
      %34 = vector.multi_reduction <add>, %33, %cst_24 [0] : vector<4x8x128xf32> to vector<8x128xf32>
      %35 = arith.addf %29, %34 : vector<8x128xf32>
      %c0_25 = arith.constant 0 : index
      %c1_26 = arith.constant 1 : index
      %c0_27 = arith.constant 0 : index
      %c0_28 = arith.constant 0 : index
      %36 = vector.load %arg5[%c0_25, %c1_26, %c0_27, %c0_28] : memref<1x4x8x128xf32, #tpu.memory_space<vmem>>, vector<1x1x8x128xf32>
      %37 = vector.shape_cast %36 : vector<1x1x8x128xf32> to vector<8x128xf32>
      %38 = vector.shape_cast %35 : vector<8x128xf32> to vector<1x1x8x128xf32>
      tpu.vector_store %arg5[%c0_25, %c1_26, %c0_27, %c0_28], %38 {strides = array<i32>} : memref<1x4x8x128xf32, #tpu.memory_space<vmem>>, vector<1x1x8x128xf32>,
      %c0_29 = arith.constant 0 : index
      %c2 = arith.constant 2 : index
      %c0_30 = arith.constant 0 : index
      %c0_31 = arith.constant 0 : index
      %39 = vector.load %arg5[%c0_29, %c2, %c0_30, %c0_31] : memref<1x4x8x128xf32, #tpu.memory_space<vmem>>, vector<1x1x8x128xf32>
      %40 = vector.shape_cast %39 : vector<1x1x8x128xf32> to vector<8x128xf32>
      %cst_32 = arith.constant 0.000000e+00 : f32
      %41 = vector.broadcast %cst_32 : f32 to vector<32x128xf32>
      %42 = arith.select %17, %11, %41 : vector<32x128xi1>, vector<32x128xf32>
      %43 = vector.shape_cast %42 : vector<32x128xf32> to vector<4x8x128xf32>
      %cst_33 = arith.constant dense<0.000000e+00> : vector<8x128xf32>
      %44 = vector.multi_reduction <add>, %43, %cst_33 [0] : vector<4x8x128xf32> to vector<8x128xf32>
      %45 = arith.addf %40, %44 : vector<8x128xf32>
      %c0_34 = arith.constant 0 : index
      %c2_35 = arith.constant 2 : index
      %c0_36 = arith.constant 0 : index
      %c0_37 = arith.constant 0 : index
      %46 = vector.load %arg5[%c0_34, %c2_35, %c0_36, %c0_37] : memref<1x4x8x128xf32, #tpu.memory_space<vmem>>, vector<1x1x8x128xf32>
      %47 = vector.shape_cast %46 : vector<1x1x8x128xf32> to vector<8x128xf32>
      %48 = vector.shape_cast %45 : vector<8x128xf32> to vector<1x1x8x128xf32>
      tpu.vector_store %arg5[%c0_34, %c2_35, %c0_36, %c0_37], %48 {strides = array<i32>} : memref<1x4x8x128xf32, #tpu.memory_space<vmem>>, vector<1x1x8x128xf32>,
      %c0_38 = arith.constant 0 : index
      %c3 = arith.constant 3 : index
      %c0_39 = arith.constant 0 : index
      %c0_40 = arith.constant 0 : index
      %49 = vector.load %arg5[%c0_38, %c3, %c0_39, %c0_40] : memref<1x4x8x128xf32, #tpu.memory_space<vmem>>, vector<1x1x8x128xf32>
      %50 = vector.shape_cast %49 : vector<1x1x8x128xf32> to vector<8x128xf32>
      %cst_41 = arith.constant 1.000000e+00 : f32
      %cst_42 = arith.constant 0.000000e+00 : f32
      %51 = vector.broadcast %cst_41 : f32 to vector<32x128xf32>
      %52 = vector.broadcast %cst_42 : f32 to vector<32x128xf32>
      %53 = arith.select %17, %51, %52 : vector<32x128xi1>, vector<32x128xf32>
      %54 = vector.shape_cast %53 : vector<32x128xf32> to vector<4x8x128xf32>
      %cst_43 = arith.constant dense<0.000000e+00> : vector<8x128xf32>
      %55 = vector.multi_reduction <add>, %54, %cst_43 [0] : vector<4x8x128xf32> to vector<8x128xf32>
      %56 = arith.addf %50, %55 : vector<8x128xf32>
      %c0_44 = arith.constant 0 : index
      %c3_45 = arith.constant 3 : index
      %c0_46 = arith.constant 0 : index
      %c0_47 = arith.constant 0 : index
      %57 = vector.load %arg5[%c0_44, %c3_45, %c0_46, %c0_47] : memref<1x4x8x128xf32, #tpu.memory_space<vmem>>, vector<1x1x8x128xf32>
      %58 = vector.shape_cast %57 : vector<1x1x8x128xf32> to vector<8x128xf32>
      %59 = vector.shape_cast %56 : vector<8x128xf32> to vector<1x1x8x128xf32>
      tpu.vector_store %arg5[%c0_44, %c3_45, %c0_46, %c0_47], %59 {strides = array<i32>} : memref<1x4x8x128xf32, #tpu.memory_space<vmem>>, vector<1x1x8x128xf32>,
    } else {
    }
    %c0_i32_3 = arith.constant 0 : i32
    %8 = arith.cmpi eq, %1, %c0_i32_3 : i32
    %9 = arith.extui %8 : i1 to i32
    %c0_i32_4 = arith.constant 0 : i32
    %10 = arith.cmpi ne, %9, %c0_i32_4 : i32
    scf.if %10 {
      %c0 = arith.constant 0 : index
      %11 = memref.load %arg2[%c0] : memref<1xi32, #tpu.memory_space<smem>>
      %c4096_i32 = arith.constant 4096 : i32
      %12 = arith.muli %1, %c4096_i32 : i32
      %13 = tpu.iota {dimensions = array<i32: 0>} : vector<32x128xi32>
      %14 = tpu.iota {dimensions = array<i32: 1>} : vector<32x128xi32>
      %c128_i32 = arith.constant 128 : i32
      %15 = vector.broadcast %c128_i32 : i32 to vector<32x128xi32>
      %16 = arith.muli %13, %15 : vector<32x128xi32>
      %17 = vector.broadcast %12 : i32 to vector<32x128xi32>
      %18 = arith.addi %17, %16 : vector<32x128xi32>
      %19 = arith.addi %18, %14 : vector<32x128xi32>
      %20 = vector.broadcast %11 : i32 to vector<32x128xi32>
      %21 = arith.cmpi slt, %19, %20 : vector<32x128xi32>
      %c0_5 = arith.constant 0 : index
      %c0_6 = arith.constant 0 : index
      %22 = vector.load %arg3[%c0_5, %c0_6] : memref<32x128xf32, #tpu.memory_space<vmem>>, vector<32x128xf32>
      %c0_7 = arith.constant 0 : index
      %c0_8 = arith.constant 0 : index
      %23 = vector.load %arg4[%c0_7, %c0_8] : memref<32x128xi8, #tpu.memory_space<vmem>>, vector<32x128xi8>
      %24 = arith.extsi %23 : vector<32x128xi8> to vector<32x128xi32>
      %c0_i32_9 = arith.constant 0 : i32
      %25 = vector.broadcast %c0_i32_9 : i32 to vector<32x128xi32>
      %26 = arith.cmpi eq, %24, %25 : vector<32x128xi32>
      %c1_i32_10 = arith.constant 1 : i32
      %27 = vector.broadcast %c1_i32_10 : i32 to vector<32x128xi32>
      %28 = arith.cmpi eq, %24, %27 : vector<32x128xi32>
      %29 = arith.andi %26, %21 : vector<32x128xi1>
      %30 = arith.andi %28, %21 : vector<32x128xi1>
      %c0_11 = arith.constant 0 : index
      %c0_12 = arith.constant 0 : index
      %c0_13 = arith.constant 0 : index
      %c0_14 = arith.constant 0 : index
      %31 = vector.load %arg5[%c0_11, %c0_12, %c0_13, %c0_14] : memref<1x4x8x128xf32, #tpu.memory_space<vmem>>, vector<1x1x8x128xf32>
      %32 = vector.shape_cast %31 : vector<1x1x8x128xf32> to vector<8x128xf32>
      %cst = arith.constant 0.000000e+00 : f32
      %33 = vector.broadcast %cst : f32 to vector<32x128xf32>
      %34 = arith.select %29, %22, %33 : vector<32x128xi1>, vector<32x128xf32>
      %35 = vector.shape_cast %34 : vector<32x128xf32> to vector<4x8x128xf32>
      %cst_15 = arith.constant dense<0.000000e+00> : vector<8x128xf32>
      %36 = vector.multi_reduction <add>, %35, %cst_15 [0] : vector<4x8x128xf32> to vector<8x128xf32>
      %37 = arith.addf %32, %36 : vector<8x128xf32>
      %c0_16 = arith.constant 0 : index
      %c0_17 = arith.constant 0 : index
      %c0_18 = arith.constant 0 : index
      %c0_19 = arith.constant 0 : index
      %38 = vector.load %arg5[%c0_16, %c0_17, %c0_18, %c0_19] : memref<1x4x8x128xf32, #tpu.memory_space<vmem>>, vector<1x1x8x128xf32>
      %39 = vector.shape_cast %38 : vector<1x1x8x128xf32> to vector<8x128xf32>
      %40 = vector.shape_cast %37 : vector<8x128xf32> to vector<1x1x8x128xf32>
      tpu.vector_store %arg5[%c0_16, %c0_17, %c0_18, %c0_19], %40 {strides = array<i32>} : memref<1x4x8x128xf32, #tpu.memory_space<vmem>>, vector<1x1x8x128xf32>,
      %c0_20 = arith.constant 0 : index
      %c1 = arith.constant 1 : index
      %c0_21 = arith.constant 0 : index
      %c0_22 = arith.constant 0 : index
      %41 = vector.load %arg5[%c0_20, %c1, %c0_21, %c0_22] : memref<1x4x8x128xf32, #tpu.memory_space<vmem>>, vector<1x1x8x128xf32>
      %42 = vector.shape_cast %41 : vector<1x1x8x128xf32> to vector<8x128xf32>
      %cst_23 = arith.constant 1.000000e+00 : f32
      %cst_24 = arith.constant 0.000000e+00 : f32
      %43 = vector.broadcast %cst_23 : f32 to vector<32x128xf32>
      %44 = vector.broadcast %cst_24 : f32 to vector<32x128xf32>
      %45 = arith.select %29, %43, %44 : vector<32x128xi1>, vector<32x128xf32>
      %46 = vector.shape_cast %45 : vector<32x128xf32> to vector<4x8x128xf32>
      %cst_25 = arith.constant dense<0.000000e+00> : vector<8x128xf32>
      %47 = vector.multi_reduction <add>, %46, %cst_25 [0] : vector<4x8x128xf32> to vector<8x128xf32>
      %48 = arith.addf %42, %47 : vector<8x128xf32>
      %c0_26 = arith.constant 0 : index
      %c1_27 = arith.constant 1 : index
      %c0_28 = arith.constant 0 : index
      %c0_29 = arith.constant 0 : index
      %49 = vector.load %arg5[%c0_26, %c1_27, %c0_28, %c0_29] : memref<1x4x8x128xf32, #tpu.memory_space<vmem>>, vector<1x1x8x128xf32>
      %50 = vector.shape_cast %49 : vector<1x1x8x128xf32> to vector<8x128xf32>
      %51 = vector.shape_cast %48 : vector<8x128xf32> to vector<1x1x8x128xf32>
      tpu.vector_store %arg5[%c0_26, %c1_27, %c0_28, %c0_29], %51 {strides = array<i32>} : memref<1x4x8x128xf32, #tpu.memory_space<vmem>>, vector<1x1x8x128xf32>,
      %c0_30 = arith.constant 0 : index
      %c2 = arith.constant 2 : index
      %c0_31 = arith.constant 0 : index
      %c0_32 = arith.constant 0 : index
      %52 = vector.load %arg5[%c0_30, %c2, %c0_31, %c0_32] : memref<1x4x8x128xf32, #tpu.memory_space<vmem>>, vector<1x1x8x128xf32>
      %53 = vector.shape_cast %52 : vector<1x1x8x128xf32> to vector<8x128xf32>
      %cst_33 = arith.constant 0.000000e+00 : f32
      %54 = vector.broadcast %cst_33 : f32 to vector<32x128xf32>
      %55 = arith.select %30, %22, %54 : vector<32x128xi1>, vector<32x128xf32>
      %56 = vector.shape_cast %55 : vector<32x128xf32> to vector<4x8x128xf32>
      %cst_34 = arith.constant dense<0.000000e+00> : vector<8x128xf32>
      %57 = vector.multi_reduction <add>, %56, %cst_34 [0] : vector<4x8x128xf32> to vector<8x128xf32>
      %58 = arith.addf %53, %57 : vector<8x128xf32>
      %c0_35 = arith.constant 0 : index
      %c2_36 = arith.constant 2 : index
      %c0_37 = arith.constant 0 : index
      %c0_38 = arith.constant 0 : index
      %59 = vector.load %arg5[%c0_35, %c2_36, %c0_37, %c0_38] : memref<1x4x8x128xf32, #tpu.memory_space<vmem>>, vector<1x1x8x128xf32>
      %60 = vector.shape_cast %59 : vector<1x1x8x128xf32> to vector<8x128xf32>
      %61 = vector.shape_cast %58 : vector<8x128xf32> to vector<1x1x8x128xf32>
      tpu.vector_store %arg5[%c0_35, %c2_36, %c0_37, %c0_38], %61 {strides = array<i32>} : memref<1x4x8x128xf32, #tpu.memory_space<vmem>>, vector<1x1x8x128xf32>,
      %c0_39 = arith.constant 0 : index
      %c3 = arith.constant 3 : index
      %c0_40 = arith.constant 0 : index
      %c0_41 = arith.constant 0 : index
      %62 = vector.load %arg5[%c0_39, %c3, %c0_40, %c0_41] : memref<1x4x8x128xf32, #tpu.memory_space<vmem>>, vector<1x1x8x128xf32>
      %63 = vector.shape_cast %62 : vector<1x1x8x128xf32> to vector<8x128xf32>
      %cst_42 = arith.constant 1.000000e+00 : f32
      %cst_43 = arith.constant 0.000000e+00 : f32
      %64 = vector.broadcast %cst_42 : f32 to vector<32x128xf32>
      %65 = vector.broadcast %cst_43 : f32 to vector<32x128xf32>
      %66 = arith.select %30, %64, %65 : vector<32x128xi1>, vector<32x128xf32>
      %67 = vector.shape_cast %66 : vector<32x128xf32> to vector<4x8x128xf32>
      %cst_44 = arith.constant dense<0.000000e+00> : vector<8x128xf32>
      %68 = vector.multi_reduction <add>, %67, %cst_44 [0] : vector<4x8x128xf32> to vector<8x128xf32>
      %69 = arith.addf %63, %68 : vector<8x128xf32>
      %c0_45 = arith.constant 0 : index
      %c3_46 = arith.constant 3 : index
      %c0_47 = arith.constant 0 : index
      %c0_48 = arith.constant 0 : index
      %70 = vector.load %arg5[%c0_45, %c3_46, %c0_47, %c0_48] : memref<1x4x8x128xf32, #tpu.memory_space<vmem>>, vector<1x1x8x128xf32>
      %71 = vector.shape_cast %70 : vector<1x1x8x128xf32> to vector<8x128xf32>
      %72 = vector.shape_cast %69 : vector<8x128xf32> to vector<1x1x8x128xf32>
      tpu.vector_store %arg5[%c0_45, %c3_46, %c0_47, %c0_48], %72 {strides = array<i32>} : memref<1x4x8x128xf32, #tpu.memory_space<vmem>>, vector<1x1x8x128xf32>,
    } else {
    }
    return
  }
  func.func @transform_0(%arg0: i32, %arg1: i32, %arg2: memref<1xi32, #tpu.memory_space<smem>>) -> (i32, i32) {
    %c1_i32 = arith.constant 1 : i32
    %0 = arith.muli %arg0, %c1_i32 : i32
    %1 = arith.addi %0, %arg1 : i32
    %c0_i32 = arith.constant 0 : i32
    %2 = arith.minsi %1, %c0_i32 : i32
    %c0_i32_0 = arith.constant 0 : i32
    %c0_i32_1 = arith.constant 0 : i32
    return %2, %c0_i32_0 : i32, i32
  }
  func.func @transform_1(%arg0: i32, %arg1: i32, %arg2: memref<1xi32, #tpu.memory_space<smem>>) -> (i32, i32) {
    %c1_i32 = arith.constant 1 : i32
    %0 = arith.muli %arg0, %c1_i32 : i32
    %1 = arith.addi %0, %arg1 : i32
    %c0_i32 = arith.constant 0 : i32
    %2 = arith.minsi %1, %c0_i32 : i32
    %c0_i32_0 = arith.constant 0 : i32
    %c0_i32_1 = arith.constant 0 : i32
    return %2, %c0_i32_0 : i32, i32
  }
  func.func @transform_2(%arg0: i32, %arg1: i32, %arg2: memref<1xi32, #tpu.memory_space<smem>>) -> (i32, i32, i32, i32) {
    %c0_i32 = arith.constant 0 : i32
    %c0_i32_0 = arith.constant 0 : i32
    %c0_i32_1 = arith.constant 0 : i32
    %c0_i32_2 = arith.constant 0 : i32
    return %arg0, %c0_i32, %c0_i32_0, %c0_i32_1 : i32, i32, i32, i32
  }
}

</mosaic_0001>

<llo_original>
// kernel: tpu_custom_call.1
$region0: #{tpu_custom_call.1}
  #allocation0 [shape = 'u32[]', space=smem, size = 0x4, offset = 0x4, fixed_abs, tag = 'smem constant byte address 0x4 - core index']
  #allocation1 [shape = 'u32[144,128]{1,0:T(1,128)}', space=vmem, size = 0x12000, scoped, tag = 'internal scratch']
  #allocation2 [shape = 's32[1]{0}', space=sflag, size = 0x4, scoped, tag = 'scoped memory for tpu_custom_call.1']
  #allocation3 [shape = 's32[1]{0:T(128)S(6)}', space=smem, size = 0x200, scoped, tag = 'prefetched SMEM operand 0']
  %s0 = inlined_call_operand.<no memory space> [shape: s32[1], index: 0, kind: input, shape index: {}]
  %s1 = inlined_call_operand.vmem [shape: f32[2,128], index: 1, kind: input, shape index: {}]
  %s2 = inlined_call_operand.vmem [shape: s8[2,128], index: 2, kind: input, shape index: {}]
  %s3 = inlined_call_operand.hbm [shape: f32[2,4,8,128], index: 3, kind: output, shape index: {}]
  %s4 = sld [smem:[#allocation0]]
  $region53: #{tpu_custom_call.1} parent=0
    _
  %s6 = ssub.s32 1, %s4
  %s7 = scalar_select 0, %s6, %s4
  %8 = sst [smem:[#allocation3]] %s0
  $region1: #{tpu_custom_call.1} parent=0
    #allocation4 [shape = 'u8[32768]{0}', space=vmem, size = 0x8000, scoped, tag = 'output window, operand 0']
    #allocation5 [shape = 's32[2]{0}', space=sflag, size = 0x8, scoped, tag = 'scoped memory for tpu_custom_call.1']
    %9 = vsyncpa [#allocation5], 0
    %s10 = scalar_lea.sflag [#allocation5], 1
    %11 = vsyncpa %s10, 0
    loop: start=0, step=1, limit=4
    $region2: #{tpu_custom_call.1} parent=1 // loop_pre_header
      _
    $region3: #{tpu_custom_call.1} parent=1 // loop_header
      %s13 = sphi 0, %s17
      %p14 = scmp.ge.s32.totalorder %s13, 4
      %s20 = sphi 0, %s32
      %s21 = sphi 0, %s28
      %s22 = sphi 0, %s20
      %s23 = sphi 0, %s21
      %s24 = sphi 0, %s22
      %s25 = sphi 0, %s23
      %s41 = sphi 0, %s43
      %s44 = sphi 0, %s41
      %s45 = sphi 0, %s44
      %s61 = sphi 0, %s45
      %s73 = sphi 0, %s75
      %s76 = sphi 0, %s73
      %s77 = sphi 0, %s76
      %s93 = sphi 0, %s77
      %s99 = sphi 0, %s101
      %s102 = sphi 0, %s99
      %s103 = sphi 0, %s102
      %s119 = sphi 0, %s103
    $region4: #{tpu_custom_call.1} parent=1 // loop_header_branch
      %16 = sbr.rel (%p14) target = $region8
    $region5: #{tpu_custom_call.1} parent=1 // loop_body
      %s18 = ssub.s32 %s13, 1
      %s19 = ssub.s32 %s13, 2
      %s26 = sadd.s32 1, %s21
      %p27 = scmp.ge.s32.totalorder %s26, 1
      %s28 = scalar_select %p27, 0, %s26
      %s29 = sadd.s32 1, %s20
      %s30 = scalar_select %p27, %s29, %s20
      %p31 = scmp.ge.s32.totalorder %s30, 2
      %s32 = scalar_select %p31, 0, %s30
      %s33 = sadd.s32 %s20, %s21
      %p34 = scmp.lt.s32.totalorder %s33, 0
      %s35 = scalar_select %p34, %s33, 0
      %s36 = sadd.s32 %s32, %s28
      %p37 = scmp.lt.s32.totalorder %s36, 0
      %s38 = scalar_select %p37, %s36, 0
      %s39 = ssub.s32 %s35, %s38
      %p40 = scmp.eq.s32.totalorder %s39, 0
      %s42 = sadd.s32 %s41, 1
      %s43 = scalar_select %p40, %s41, %s42
      %p46 = pneg %p40
      %p47 = scmp.eq.s32.totalorder %s13, 1
      %p48 = por %p46, %p47
      %p49 = scmp.ne.s32.totalorder %s41, %s44
      %p50 = scmp.eq.s32.totalorder %s13, 0
      %p51 = por %p49, %p50
      %p52 = scmp.ne.s32.totalorder %s41, %s44
      %p53 = scmp.eq.s32.totalorder %s18, 1
      %p54 = por %p52, %p53
      %p55 = scmp.ne.s32.totalorder %s44, %s45
      %p56 = scmp.eq.s32.totalorder %s18, 0
      %p57 = por %p55, %p56
      %p58 = scmp.ne.s32.totalorder %s44, %s45
      %p59 = scmp.eq.s32.totalorder %s19, 1
      %p60 = por %p58, %p59
      %p62 = scmp.ne.s32.totalorder %s45, %s61
      %p63 = scmp.eq.s32.totalorder %s19, 0
      %p64 = por %p62, %p63
      %s65 = sadd.s32 %s20, %s21
      %p66 = scmp.lt.s32.totalorder %s65, 0
      %s67 = scalar_select %p66, %s65, 0
      %s68 = sadd.s32 %s32, %s28
      %p69 = scmp.lt.s32.totalorder %s68, 0
      %s70 = scalar_select %p69, %s68, 0
      %s71 = ssub.s32 %s67, %s70
      %p72 = scmp.eq.s32.totalorder %s71, 0
      %s74 = sadd.s32 %s73, 1
      %s75 = scalar_select %p72, %s73, %s74
      %p78 = pneg %p72
      %p79 = scmp.eq.s32.totalorder %s13, 1
      %p80 = por %p78, %p79
      %p81 = scmp.ne.s32.totalorder %s73, %s76
      %p82 = scmp.eq.s32.totalorder %s13, 0
      %p83 = por %p81, %p82
      %p84 = scmp.ne.s32.totalorder %s73, %s76
      %p85 = scmp.eq.s32.totalorder %s18, 1
      %p86 = por %p84, %p85
      %p87 = scmp.ne.s32.totalorder %s76, %s77
      %p88 = scmp.eq.s32.totalorder %s18, 0
      %p89 = por %p87, %p88
      %p90 = scmp.ne.s32.totalorder %s76, %s77
      %p91 = scmp.eq.s32.totalorder %s19, 1
      %p92 = por %p90, %p91
      %p94 = scmp.ne.s32.totalorder %s77, %s93
      %p95 = scmp.eq.s32.totalorder %s19, 0
      %p96 = por %p94, %p95
      %s97 = ssub.s32 %s20, %s32
      %p98 = scmp.eq.s32.totalorder %s97, 0
      %s100 = sadd.s32 %s99, 1
      %s101 = scalar_select %p98, %s99, %s100
      %p104 = pneg %p98
      %p105 = scmp.eq.s32.totalorder %s13, 1
      %p106 = por %p104, %p105
      %p107 = scmp.ne.s32.totalorder %s99, %s102
      %p108 = scmp.eq.s32.totalorder %s13, 0
      %p109 = por %p107, %p108
      %p110 = scmp.ne.s32.totalorder %s99, %s102
      %p111 = scmp.eq.s32.totalorder %s18, 1
      %p112 = por %p110, %p111
      %p113 = scmp.ne.s32.totalorder %s102, %s103
      %p114 = scmp.eq.s32.totalorder %s18, 0
      %p115 = por %p113, %p114
      %p116 = scmp.ne.s32.totalorder %s102, %s103
      %p117 = scmp.eq.s32.totalorder %s19, 1
      %p118 = por %p116, %p117
      %p120 = scmp.ne.s32.totalorder %s103, %s119
      %p121 = scmp.eq.s32.totalorder %s19, 0
      %p122 = por %p120, %p121
      %p123 = scmp.le.s32.totalorder 1, %s13
      %p124 = scmp.lt.s32.totalorder %s13, 3
      %p125 = pnand %p123, %p124
      %p126 = pneg %p125
      // Predicated region
      $region9: #{tpu_custom_call.1} parent=5 // pred_check
        _
      $region10: #{tpu_custom_call.1} parent=5 // pred_check_branch
        %128 = sbr.rel (%p125) target = $region12
      $region11: #{tpu_custom_call.1} parent=5 // pred_region
        %s129 = ssub.s32 %s13, 1
      $region12: #{tpu_custom_call.1} parent=5 // pred_fallthru
        _
      %p130 = scmp.lt.s32.totalorder %s13, 2
      // Predicated region
      $region13: #{tpu_custom_call.1} parent=5 // pred_check
        %p131 = pneg %p130
      $region14: #{tpu_custom_call.1} parent=5 // pred_check_branch
        %133 = sbr.rel (%p131) target = $region16
      $region15: #{tpu_custom_call.1} parent=5 // pred_region
        // Predicated region
        $region17: #{tpu_custom_call.1} parent=15 // pred_check
          %p134 = pneg %p51
        $region18: #{tpu_custom_call.1} parent=15 // pred_check_branch
          %136 = sbr.rel (%p134) target = $region20
        $region19: #{tpu_custom_call.1} parent=15 // pred_region
          %s137 = sadd.s32 %s20, %s21
          %p138 = scmp.lt.s32.totalorder %s137, 0
          %s139 = scalar_select %p138, %s137, 0
          %s140 = smul.u32 16, %s139
          %s141 = ssub.s32 1, %s140
          %s142 = smul.u32 32, %s141
          %p143 = scmp.lt.s32.totalorder %s140, 0
          %s144 = scalar_select %p143, %s140, 0
          %s145 = smul.addr %s144, 2
          %s146 = scalar_lea.vmem %s1, %s145
          %s147 = sadd.s32 %s20, %s21
          %p148 = scmp.lt.s32.totalorder %s147, 0
          %s149 = scalar_select %p148, %s147, 0
          %s150 = smul.u32 16, %s149
          %s151 = ssub.s32 1, %s150
          %s152 = smul.u32 32, %s151
        $region20: #{tpu_custom_call.1} parent=15 // pred_fallthru
          _
        // Predicated region
        $region21: #{tpu_custom_call.1} parent=15 // pred_check
          %p153 = pneg %p83
        $region22: #{tpu_custom_call.1} parent=15 // pred_check_branch
          %155 = sbr.rel (%p153) target = $region24
        $region23: #{tpu_custom_call.1} parent=15 // pred_region
          %s156 = sadd.s32 %s20, %s21
          %p157 = scmp.lt.s32.totalorder %s156, 0
          %s158 = scalar_select %p157, %s156, 0
          %s159 = smul.u32 8, %s158
          %s160 = ssub.s32 1, %s159
          %s161 = smul.u32 16, %s160
          %p162 = scmp.lt.s32.totalorder %s159, 0
          %s163 = scalar_select %p162, %s159, 0
          %s164 = scalar_lea.vmem %s2, %s163
          %s165 = sadd.s32 %s20, %s21
          %p166 = scmp.lt.s32.totalorder %s165, 0
          %s167 = scalar_select %p166, %s165, 0
          %s168 = smul.u32 8, %s167
          %s169 = ssub.s32 1, %s168
          %s170 = smul.u32 16, %s169
        $region24: #{tpu_custom_call.1} parent=15 // pred_fallthru
          _
      $region16: #{tpu_custom_call.1} parent=5 // pred_fallthru
        _
      %p171 = scmp.le.s32.totalorder 1, %s13
      %p172 = scmp.lt.s32.totalorder %s13, 3
      %p173 = pnand %p171, %p172
      %p174 = pneg %p173
      // Predicated region
      $region25: #{tpu_custom_call.1} parent=5 // pred_check
        _
      $region26: #{tpu_custom_call.1} parent=5 // pred_check_branch
        %176 = sbr.rel (%p173) target = $region28
      $region27: #{tpu_custom_call.1} parent=5 // pred_region
        %s177 = ssub.s32 %s13, 1
        %s178 = sadd.s32 %s22, %s23
        %p179 = scmp.lt.s32.totalorder %s178, 0
        %s180 = scalar_select %p179, %s178, 0
        %s181 = smul.u32 16, %s180
        %s182 = ssub.s32 1, %s181
        %s183 = smul.u32 32, %s182
        %p184 = scmp.lt.s32.totalorder %s181, 0
        %s185 = scalar_select %p184, %s181, 0
        %s186 = smul.addr %s185, 2
        %s187 = scalar_lea.vmem %s1, %s186
        %p188 = pneg %p57
        %p189 = pneg %p54
        %s190 = sadd.s32 %s22, %s23
        %p191 = scmp.lt.s32.totalorder %s190, 0
        %s192 = scalar_select %p191, %s190, 0
        %s193 = smul.u32 8, %s192
        %s194 = ssub.s32 1, %s193
        %s195 = smul.u32 16, %s194
        %p196 = scmp.lt.s32.totalorder %s193, 0
        %s197 = scalar_select %p196, %s193, 0
        %s198 = scalar_lea.vmem %s2, %s197
        %p199 = pneg %p89
        %p200 = pneg %p86
        %p201 = pneg %p115
        %p202 = pneg %p112
        %s203 = sand.u32 %s102, 1
        %s204 = scalar_lea.sflag [#allocation5], %s203
        %s205 = sand.u32 %s102, 1
        %s206 = smul.addr %s205, 32
        %s207 = scalar_lea.vmem [#allocation4], %s206
        %s208 = sadd.s32 %s22, %s23
        %p209 = scmp.lt.s32.totalorder %s208, 0
        %s210 = scalar_select %p209, %s208, 0
        %s211 = smul.u32 16, %s210
        %s212 = ssub.s32 1, %s211
        %s213 = smul.u32 32, %s212
        %p214 = scmp.lt.s32.totalorder %s211, 0
        %s215 = scalar_select %p214, %s211, 0
        %s216 = smul.addr %s215, 2
        %s217 = scalar_lea.vmem %s1, %s216
        %s218 = sadd.s32 %s22, %s23
        %p219 = scmp.lt.s32.totalorder %s218, 0
        %s220 = scalar_select %p219, %s218, 0
        %s221 = smul.u32 16, %s220
        %s222 = ssub.s32 1, %s221
        %s223 = smul.u32 32, %s222
        %s224 = sadd.s32 %s22, %s23
        %p225 = scmp.lt.s32.totalorder %s224, 0
        %s226 = scalar_select %p225, %s224, 0
        %s227 = smul.u32 8, %s226
        %s228 = ssub.s32 1, %s227
        %s229 = smul.u32 16, %s228
        %p230 = scmp.lt.s32.totalorder %s227, 0
        %s231 = scalar_select %p230, %s227, 0
        %s232 = scalar_lea.vmem %s2, %s231
        %s233 = sadd.s32 %s22, %s23
        %p234 = scmp.lt.s32.totalorder %s233, 0
        %s235 = scalar_select %p234, %s233, 0
        %s236 = smul.u32 8, %s235
        %s237 = ssub.s32 1, %s236
        %s238 = smul.u32 16, %s237
        %s239 = sadd.s32 %s22, %s23
        %p240 = scmp.eq.s32.totalorder %s23, 0
        // Predicated region
        $region29: #{tpu_custom_call.1} parent=27 // pred_check
          %p241 = pneg %p240
        $region30: #{tpu_custom_call.1} parent=27 // pred_check_branch
          %243 = sbr.rel (%p241) target = $region32
        $region31: #{tpu_custom_call.1} parent=27 // pred_region
          %244 = vst [vmem:[%s207] sm:$0xff] 0.0
          %245 = vst [vmem:[%s207 + $0x8] sm:$0xff] 0.0
          %246 = vst [vmem:[%s207 + $0x10] sm:$0xff] 0.0
          %247 = vst [vmem:[%s207 + $0x18] sm:$0xff] 0.0
        $region32: #{tpu_custom_call.1} parent=27 // pred_fallthru
          _
        %p248 = scmp.lt.s32.totalorder %s239, 0
        // Predicated region
        $region33: #{tpu_custom_call.1} parent=27 // pred_check
          %p249 = pneg %p248
        $region34: #{tpu_custom_call.1} parent=27 // pred_check_branch
          %251 = sbr.rel (%p249) target = $region36
        $region35: #{tpu_custom_call.1} parent=27 // pred_region
          %v252 = vld [vmem:[%s217] sm:$0xff]
          %v253 = vld [vmem:[%s217 + $0x8] sm:$0xff]
          %v254 = vld [vmem:[%s217 + $0x10] sm:$0xff]
          %v255 = vld [vmem:[%s217 + $0x18] sm:$0xff]
          %v256 = vld [vmem:[%s232] sm:$0x1]
          %v257 = vld [vmem:[%s232 + $0x1] sm:$0x1]
          %v258 = vld [vmem:[%s232 + $0x2] sm:$0x1]
          %v259 = vld [vmem:[%s232 + $0x3] sm:$0x1]
          %v260 = vld [vmem:[%s232 + $0x4] sm:$0x1]
          %v261 = vld [vmem:[%s232 + $0x5] sm:$0x1]
          %v262 = vld [vmem:[%s232 + $0x6] sm:$0x1]
          %v263 = vld [vmem:[%s232 + $0x7] sm:$0x1]
          %v264 = vunpack.c.0.s8 %v256
          %v265 = vunpack.c.0.s8 %v257
          %v266 = vunpack.c.0.s8 %v258
          %v267 = vunpack.c.0.s8 %v259
          %v268 = vunpack.c.0.s8 %v260
          %v269 = vunpack.c.0.s8 %v261
          %v270 = vunpack.c.0.s8 %v262
          %v271 = vunpack.c.0.s8 %v263
          %vm272 = vcmp.eq.s32.totalorder %v264, 0
          %vm273 = vcmp.eq.s32.totalorder %v265, 0
          %vm274 = vcmp.eq.s32.totalorder %v266, 0
          %vm275 = vcmp.eq.s32.totalorder %v267, 0
          %vm276 = vcmp.eq.s32.totalorder %v268, 0
          %vm277 = vcmp.eq.s32.totalorder %v269, 0
          %vm278 = vcmp.eq.s32.totalorder %v270, 0
          %vm279 = vcmp.eq.s32.totalorder %v271, 0
          %vm280 = vcmp.eq.s32.totalorder %v264, 1
          %vm281 = vcmp.eq.s32.totalorder %v265, 1
          %vm282 = vcmp.eq.s32.totalorder %v266, 1
          %vm283 = vcmp.eq.s32.totalorder %v267, 1
          %vm284 = vcmp.eq.s32.totalorder %v268, 1
          %vm285 = vcmp.eq.s32.totalorder %v269, 1
          %vm286 = vcmp.eq.s32.totalorder %v270, 1
          %vm287 = vcmp.eq.s32.totalorder %v271, 1
          %v288 = vld [vmem:[%s207] sm:$0xff]
          %v293 = vcombine.high %v252, %v252
          %v294 = vcombine.high %v253, %v253
          %v295 = vcombine.high %v254, %v254
          %v296 = vcombine.high %v255, %v255
          %v301 = vsel %vm272, %v252, 0.0
          %v302 = vsel %vm273, %v293, 0.0
          %v303 = vsel %vm274, %v253, 0.0
          %v304 = vsel %vm275, %v294, 0.0
          %v305 = vsel %vm276, %v254, 0.0
          %v306 = vsel %vm277, %v295, 0.0
          %v307 = vsel %vm278, %v255, 0.0
          %v308 = vsel %vm279, %v296, 0.0
          %v317 = vcombine.low %v301, %v302
          %v318 = vcombine.low %v303, %v304
          %v319 = vcombine.low %v305, %v306
          %v320 = vcombine.low %v307, %v308
          %v325 = vadd.f32 %v317, %v318
          %v326 = vadd.f32 %v325, %v319
          %v327 = vadd.f32 %v326, %v320
          %v328 = vadd.f32 %v288, %v327
          %329 = vst [vmem:[%s207] sm:$0xff] %v328
          %s330 = scalar_lea.vmem %s207, 8 [#allocation4]
          %v331 = vld [vmem:[%s330] sm:$0xff]
          %v332 = vsel %vm272, 1.0, 0.0
          %v333 = vsel %vm273, 1.0, 0.0
          %v334 = vsel %vm274, 1.0, 0.0
          %v335 = vsel %vm275, 1.0, 0.0
          %v336 = vsel %vm276, 1.0, 0.0
          %v337 = vsel %vm277, 1.0, 0.0
          %v338 = vsel %vm278, 1.0, 0.0
          %v339 = vsel %vm279, 1.0, 0.0
          %v348 = vcombine.low %v332, %v333
          %v349 = vcombine.low %v334, %v335
          %v350 = vcombine.low %v336, %v337
          %v351 = vcombine.low %v338, %v339
          %v356 = vadd.f32 %v348, %v349
          %v357 = vadd.f32 %v356, %v350
          %v358 = vadd.f32 %v357, %v351
          %v359 = vadd.f32 %v331, %v358
          %360 = vst [vmem:[%s330] sm:$0xff] %v359
          %s361 = scalar_lea.vmem %s207, 16 [#allocation4]
          %v362 = vld [vmem:[%s361] sm:$0xff]
          %v363 = vsel %vm280, %v252, 0.0
          %v364 = vsel %vm281, %v293, 0.0
          %v365 = vsel %vm282, %v253, 0.0
          %v366 = vsel %vm283, %v294, 0.0
          %v367 = vsel %vm284, %v254, 0.0
          %v368 = vsel %vm285, %v295, 0.0
          %v369 = vsel %vm286, %v255, 0.0
          %v370 = vsel %vm287, %v296, 0.0
          %v379 = vcombine.low %v363, %v364
          %v380 = vcombine.low %v365, %v366
          %v381 = vcombine.low %v367, %v368
          %v382 = vcombine.low %v369, %v370
          %v387 = vadd.f32 %v379, %v380
          %v388 = vadd.f32 %v387, %v381
          %v389 = vadd.f32 %v388, %v382
          %v390 = vadd.f32 %v362, %v389
          %391 = vst [vmem:[%s361] sm:$0xff] %v390
          %s392 = scalar_lea.vmem %s207, 24 [#allocation4]
          %v393 = vld [vmem:[%s392] sm:$0xff]
          %v394 = vsel %vm280, 1.0, 0.0
          %v395 = vsel %vm281, 1.0, 0.0
          %v396 = vsel %vm282, 1.0, 0.0
          %v397 = vsel %vm283, 1.0, 0.0
          %v398 = vsel %vm284, 1.0, 0.0
          %v399 = vsel %vm285, 1.0, 0.0
          %v400 = vsel %vm286, 1.0, 0.0
          %v401 = vsel %vm287, 1.0, 0.0
          %v410 = vcombine.low %v394, %v395
          %v411 = vcombine.low %v396, %v397
          %v412 = vcombine.low %v398, %v399
          %v413 = vcombine.low %v400, %v401
          %v418 = vadd.f32 %v410, %v411
          %v419 = vadd.f32 %v418, %v412
          %v420 = vadd.f32 %v419, %v413
          %v421 = vadd.f32 %v393, %v420
          %422 = vst [vmem:[%s392] sm:$0xff] %v421
        $region36: #{tpu_custom_call.1} parent=27 // pred_fallthru
          _
        %p423 = scmp.eq.s32.totalorder %s239, 0
        // Predicated region
        $region37: #{tpu_custom_call.1} parent=27 // pred_check
          %p424 = pneg %p423
        $region38: #{tpu_custom_call.1} parent=27 // pred_check_branch
          %426 = sbr.rel (%p424) target = $region40
        $region39: #{tpu_custom_call.1} parent=27 // pred_region
          %s427 = sld [smem:[#allocation3]]
          %s428 = smul.u32 %s239, 4096
          %v429 = vlaneseq
          %v430 = vshrl.u32 %v429, 7
          %v431 = vadd.s32 %v430, 8
          %v432 = vadd.s32 %v430, 16
          %v433 = vadd.s32 %v430, 24
          %v434 = vlaneseq
          %v435 = vand.u32 %v434, 127
          %v436 = vmul.u32 %v430, 128
          %v437 = vmul.u32 %v431, 128
          %v438 = vmul.u32 %v432, 128
          %v439 = vmul.u32 %v433, 128
          %v440 = vstv %s428
          %v441 = vadd.s32 %v440, %v436
          %v442 = vadd.s32 %v440, %v437
          %v443 = vadd.s32 %v440, %v438
          %v444 = vadd.s32 %v440, %v439
          %v445 = vadd.s32 %v441, %v435
          %v446 = vadd.s32 %v442, %v435
          %v447 = vadd.s32 %v443, %v435
          %v448 = vadd.s32 %v444, %v435
          %v449 = vstv %s427
          %vm450 = vcmp.lt.s32.totalorder %v445, %v449
          %vm451 = vcmp.lt.s32.totalorder %v446, %v449
          %vm452 = vcmp.lt.s32.totalorder %v447, %v449
          %vm453 = vcmp.lt.s32.totalorder %v448, %v449
          %v454 = vld [vmem:[%s217] sm:$0xff]
          %v455 = vld [vmem:[%s217 + $0x8] sm:$0xff]
          %v456 = vld [vmem:[%s217 + $0x10] sm:$0xff]
          %v457 = vld [vmem:[%s217 + $0x18] sm:$0xff]
          %v458 = vld [vmem:[%s232] sm:$0x1]
          %v459 = vld [vmem:[%s232 + $0x1] sm:$0x1]
          %v460 = vld [vmem:[%s232 + $0x2] sm:$0x1]
          %v461 = vld [vmem:[%s232 + $0x3] sm:$0x1]
          %v462 = vld [vmem:[%s232 + $0x4] sm:$0x1]
          %v463 = vld [vmem:[%s232 + $0x5] sm:$0x1]
          %v464 = vld [vmem:[%s232 + $0x6] sm:$0x1]
          %v465 = vld [vmem:[%s232 + $0x7] sm:$0x1]
          %v466 = vunpack.c.0.s8 %v458
          %v467 = vunpack.c.0.s8 %v459
          %v468 = vunpack.c.0.s8 %v460
          %v469 = vunpack.c.0.s8 %v461
          %v470 = vunpack.c.0.s8 %v462
          %v471 = vunpack.c.0.s8 %v463
          %v472 = vunpack.c.0.s8 %v464
          %v473 = vunpack.c.0.s8 %v465
          %vm474 = vcmp.eq.s32.totalorder %v466, 0
          %vm475 = vcmp.eq.s32.totalorder %v467, 0
          %vm476 = vcmp.eq.s32.totalorder %v468, 0
          %vm477 = vcmp.eq.s32.totalorder %v469, 0
          %vm478 = vcmp.eq.s32.totalorder %v470, 0
          %vm479 = vcmp.eq.s32.totalorder %v471, 0
          %vm480 = vcmp.eq.s32.totalorder %v472, 0
          %vm481 = vcmp.eq.s32.totalorder %v473, 0
          %vm482 = vcmp.eq.s32.totalorder %v466, 1
          %vm483 = vcmp.eq.s32.totalorder %v467, 1
          %vm484 = vcmp.eq.s32.totalorder %v468, 1
          %vm485 = vcmp.eq.s32.totalorder %v469, 1
          %vm486 = vcmp.eq.s32.totalorder %v470, 1
          %vm487 = vcmp.eq.s32.totalorder %v471, 1
          %vm488 = vcmp.eq.s32.totalorder %v472, 1
          %vm489 = vcmp.eq.s32.totalorder %v473, 1
          %v490 = vsel %vm450, 1, 0
          %v491 = vsel %vm451, 1, 0
          %v492 = vsel %vm452, 1, 0
          %v493 = vsel %vm453, 1, 0
          %v494 = vcombine.high %v490, %v490
          %v495 = vcombine.high %v491, %v491
          %v496 = vcombine.high %v492, %v492
          %v497 = vcombine.high %v493, %v493
          %vm498 = vcmp.ne.s32.totalorder %v494, 0
          %vm499 = vcmp.ne.s32.totalorder %v495, 0
          %vm500 = vcmp.ne.s32.totalorder %v496, 0
          %vm501 = vcmp.ne.s32.totalorder %v497, 0
          %vm502 = vmand %vm474, %vm450
          %vm503 = vmand %vm475, %vm498
          %vm504 = vmand %vm476, %vm451
          %vm505 = vmand %vm477, %vm499
          %vm506 = vmand %vm478, %vm452
          %vm507 = vmand %vm479, %vm500
          %vm508 = vmand %vm480, %vm453
          %vm509 = vmand %vm481, %vm501
          %vm510 = vmand %vm482, %vm450
          %vm511 = vmand %vm483, %vm498
          %vm512 = vmand %vm484, %vm451
          %vm513 = vmand %vm485, %vm499
          %vm514 = vmand %vm486, %vm452
          %vm515 = vmand %vm487, %vm500
          %vm516 = vmand %vm488, %vm453
          %vm517 = vmand %vm489, %vm501
          %v518 = vld [vmem:[%s207] sm:$0xff]
          %v523 = vcombine.high %v454, %v454
          %v524 = vcombine.high %v455, %v455
          %v525 = vcombine.high %v456, %v456
          %v526 = vcombine.high %v457, %v457
          %v531 = vsel %vm502, %v454, 0.0
          %v532 = vsel %vm503, %v523, 0.0
          %v533 = vsel %vm504, %v455, 0.0
          %v534 = vsel %vm505, %v524, 0.0
          %v535 = vsel %vm506, %v456, 0.0
          %v536 = vsel %vm507, %v525, 0.0
          %v537 = vsel %vm508, %v457, 0.0
          %v538 = vsel %vm509, %v526, 0.0
          %v547 = vcombine.low %v531, %v532
          %v548 = vcombine.low %v533, %v534
          %v549 = vcombine.low %v535, %v536
          %v550 = vcombine.low %v537, %v538
          %v555 = vadd.f32 %v547, %v548
          %v556 = vadd.f32 %v555, %v549
          %v557 = vadd.f32 %v556, %v550
          %v558 = vadd.f32 %v518, %v557
          %559 = vst [vmem:[%s207] sm:$0xff] %v558
          %s560 = scalar_lea.vmem %s207, 8 [#allocation4]
          %v561 = vld [vmem:[%s560] sm:$0xff]
          %v562 = vsel %vm502, 1.0, 0.0
          %v563 = vsel %vm503, 1.0, 0.0
          %v564 = vsel %vm504, 1.0, 0.0
          %v565 = vsel %vm505, 1.0, 0.0
          %v566 = vsel %vm506, 1.0, 0.0
          %v567 = vsel %vm507, 1.0, 0.0
          %v568 = vsel %vm508, 1.0, 0.0
          %v569 = vsel %vm509, 1.0, 0.0
          %v578 = vcombine.low %v562, %v563
          %v579 = vcombine.low %v564, %v565
          %v580 = vcombine.low %v566, %v567
          %v581 = vcombine.low %v568, %v569
          %v586 = vadd.f32 %v578, %v579
          %v587 = vadd.f32 %v586, %v580
          %v588 = vadd.f32 %v587, %v581
          %v589 = vadd.f32 %v561, %v588
          %590 = vst [vmem:[%s560] sm:$0xff] %v589
          %s591 = scalar_lea.vmem %s207, 16 [#allocation4]
          %v592 = vld [vmem:[%s591] sm:$0xff]
          %v593 = vsel %vm510, %v454, 0.0
          %v594 = vsel %vm511, %v523, 0.0
          %v595 = vsel %vm512, %v455, 0.0
          %v596 = vsel %vm513, %v524, 0.0
          %v597 = vsel %vm514, %v456, 0.0
          %v598 = vsel %vm515, %v525, 0.0
          %v599 = vsel %vm516, %v457, 0.0
          %v600 = vsel %vm517, %v526, 0.0
          %v609 = vcombine.low %v593, %v594
          %v610 = vcombine.low %v595, %v596
          %v611 = vcombine.low %v597, %v598
          %v612 = vcombine.low %v599, %v600
          %v617 = vadd.f32 %v609, %v610
          %v618 = vadd.f32 %v617, %v611
          %v619 = vadd.f32 %v618, %v612
          %v620 = vadd.f32 %v592, %v619
          %621 = vst [vmem:[%s591] sm:$0xff] %v620
          %s622 = scalar_lea.vmem %s207, 24 [#allocation4]
          %v623 = vld [vmem:[%s622] sm:$0xff]
          %v624 = vsel %vm510, 1.0, 0.0
          %v625 = vsel %vm511, 1.0, 0.0
          %v626 = vsel %vm512, 1.0, 0.0
          %v627 = vsel %vm513, 1.0, 0.0
          %v628 = vsel %vm514, 1.0, 0.0
          %v629 = vsel %vm515, 1.0, 0.0
          %v630 = vsel %vm516, 1.0, 0.0
          %v631 = vsel %vm517, 1.0, 0.0
          %v640 = vcombine.low %v624, %v625
          %v641 = vcombine.low %v626, %v627
          %v642 = vcombine.low %v628, %v629
          %v643 = vcombine.low %v630, %v631
          %v648 = vadd.f32 %v640, %v641
          %v649 = vadd.f32 %v648, %v642
          %v650 = vadd.f32 %v649, %v643
          %v651 = vadd.f32 %v623, %v650
          %652 = vst [vmem:[%s622] sm:$0xff] %v651
        $region40: #{tpu_custom_call.1} parent=27 // pred_fallthru
          _
        %s653 = sand.u32 %s102, 1
        %s654 = scalar_lea.sflag [#allocation5], %s653
        %s655 = sand.u32 %s102, 1
        %s656 = smul.addr %s655, 32
        %s657 = scalar_lea.vmem [#allocation4], %s656
        // Predicated region
        $region41: #{tpu_custom_call.1} parent=27 // pred_check
          %p658 = pneg %p112
        $region42: #{tpu_custom_call.1} parent=27 // pred_check_branch
          %660 = sbr.rel (%p658) target = $region44
        $region43: #{tpu_custom_call.1} parent=27 // pred_region
          %s662 = ssub.s32 512, 512
          %663 = vsyncadd %s654, %s662
          %s664 = smul.addr %s22, 4
          %s665 = smul.addr %s664, 128
          %s666 = scalar_lea.hbm %s3, %s665
          %s667 = sshll.u32 %s657, 4
          %s668 = int_to_ptr.vmem [resolvable:$true] %s667
          %673 = dma.vmem_to_hbm [thread:$0]  %s668, 512, %s666, %s654, 128, 128, 8
        $region44: #{tpu_custom_call.1} parent=27 // pred_fallthru
          _
      $region28: #{tpu_custom_call.1} parent=5 // pred_fallthru
        _
      %p674 = scmp.le.s32.totalorder 2, %s13
      // Predicated region
      $region45: #{tpu_custom_call.1} parent=5 // pred_check
        %p675 = pneg %p674
      $region46: #{tpu_custom_call.1} parent=5 // pred_check_branch
        %677 = sbr.rel (%p675) target = $region48
      $region47: #{tpu_custom_call.1} parent=5 // pred_region
        %s678 = ssub.s32 %s13, 2
        // Predicated region
        $region49: #{tpu_custom_call.1} parent=47 // pred_check
          %p679 = pneg %p118
        $region50: #{tpu_custom_call.1} parent=47 // pred_check_branch
          %681 = sbr.rel (%p679) target = $region52
        $region51: #{tpu_custom_call.1} parent=47 // pred_region
          %s682 = sand.u32 %s103, 1
          %s683 = scalar_lea.sflag [#allocation5], %s682
          %s684 = sand.u32 %s103, 1
          %s685 = smul.addr %s684, 32
          %s686 = scalar_lea.vmem [#allocation4], %s685
          %687 = dma.done %s683, 512
        $region52: #{tpu_custom_call.1} parent=47 // pred_fallthru
          _
      $region48: #{tpu_custom_call.1} parent=5 // pred_fallthru
        _
    $region6: #{tpu_custom_call.1} parent=1 // loop_footer
      %s17 = sadd.s32 1, %s13
    $region7: #{tpu_custom_call.1} parent=1 // loop_footer_branch
      %12 = sbr.rel target = $region3
    $region8: #{tpu_custom_call.1} parent=1 // loop_exit
      _
    %688 = vsyncpa [#allocation5], 1
    %s689 = scalar_lea.sflag [#allocation5], 1
    %690 = vsyncpa %s689, 1

</llo_original>
